<compile_context>
chip_gen: v6e
topology: v6e:2x2x1
jax: 0.10.0
libtpu: 0.0.40
codegen_flags: <defaults>
</compile_context>

<pallas_src>
import functools

import jax
import jax.numpy as jnp
import numpy as np
from jax.experimental import pallas as pl
from jax.experimental.pallas import tpu as pltpu


def _sigmoid(x):
    return 1.0 / (1.0 + jnp.exp(-x))


def _softplus(x):
    # stable softplus, matches F.softplus semantics to f32 precision
    return jnp.maximum(x, 0.0) + jnp.log(1.0 + jnp.exp(-jnp.abs(x)))


def _dmol_kernel(lengths_ref, yhat_ref, target_ref, out_ref, acc_ref, *,
                 tile_t, nr_mix, num_classes, log_scale_min):
    b = pl.program_id(0)
    tt = pl.program_id(1)
    n_t = pl.num_programs(1)

    # Fresh accumulator for every batch element.
    @pl.when(tt == 0)
    def _():
        acc_ref[...] = jnp.zeros_like(acc_ref)

    length_b = lengths_ref[b]

    # Skip all compute for fully padded tiles.
    @pl.when(tt * tile_t < length_b)
    def _():
        yh = yhat_ref[...]                                   # (1, 3, nr_mix, tile_t)
        logit_probs = yh[0, 0].astype(jnp.float32)           # (nr_mix, tile_t)
        means = yh[0, 1].astype(jnp.float32)
        log_scales = jnp.maximum(yh[0, 2].astype(jnp.float32), log_scale_min)

        y = target_ref[0].astype(jnp.float32)                # (1, tile_t)

        half_bin = 1.0 / (num_classes - 1)
        centered = y - means                                 # (nr_mix, tile_t)
        inv_stdv = jnp.exp(-log_scales)
        plus_in = inv_stdv * (centered + half_bin)
        min_in = inv_stdv * (centered - half_bin)
        cdf_plus = _sigmoid(plus_in)
        cdf_min = _sigmoid(min_in)
        log_cdf_plus = plus_in - _softplus(plus_in)
        log_one_minus_cdf_min = -_softplus(min_in)
        cdf_delta = cdf_plus - cdf_min
        mid_in = inv_stdv * centered
        log_pdf_mid = mid_in - log_scales - 2.0 * _softplus(mid_in)

        inner_inner = jnp.where(
            cdf_delta > 1e-5,
            jnp.log(jnp.maximum(cdf_delta, 1e-12)),
            log_pdf_mid - np.log((num_classes - 1) / 2.0))
        inner = jnp.where(y > 0.999, log_one_minus_cdf_min, inner_inner)
        log_probs = jnp.where(y < -0.999, log_cdf_plus, inner)

        # + log_softmax over the mixture (sublane) axis
        m_lp = jnp.max(logit_probs, axis=0, keepdims=True)
        lse_lp = m_lp + jnp.log(
            jnp.sum(jnp.exp(logit_probs - m_lp), axis=0, keepdims=True))
        log_probs = log_probs + (logit_probs - lse_lp)

        # losses = -log_sum_exp over the mixture axis -> (1, tile_t)
        m2 = jnp.max(log_probs, axis=0, keepdims=True)
        lse = m2 + jnp.log(
            jnp.sum(jnp.exp(log_probs - m2), axis=0, keepdims=True))
        losses = -lse

        # sequence mask: t < lengths[b]
        t_ids = jax.lax.broadcasted_iota(jnp.int32, (1, tile_t), 1) + tt * tile_t
        mask = (t_ids < length_b).astype(jnp.float32)

        acc_ref[...] += losses * mask

    # Collapse the lane-parallel accumulator once per batch element into a
    # lane-dense (1, 128) partial-sum row (unmasked store).
    @pl.when(tt == n_t - 1)
    def _():
        lane_sums = acc_ref[:, 0:128]
        for c in range(1, tile_t // 128):
            lane_sums = lane_sums + acc_ref[:, c * 128:(c + 1) * 128]
        out_ref[...] = lane_sums.reshape(1, 1, 128)


def discretized_mixture_logistic_masked_loss(y_hat, target, lengths, *,
                                             num_classes=256,
                                             log_scale_min=-7.0,
                                             tile_t=512):
    """y_hat: (B, 3*nr_mix, T) f32, target: (B, T, 1) f32 in [-1, 1],
    lengths: (B,) int.  Returns the masked-mean discretized MoL loss."""
    B, C, T = y_hat.shape
    assert C % 3 == 0, "channel dim must be 3 * nr_mix"
    nr_mix = C // 3
    tile_t = min(tile_t, T)
    assert tile_t % 128 == 0, "tile_t must be a multiple of 128"
    assert T % tile_t == 0, "T must be a multiple of tile_t"

    # Free (metadata-only) reshapes -- no extra HBM pass.
    yh4 = jnp.reshape(y_hat, (B, 3, nr_mix, T)).astype(jnp.float32)
    tgt = jnp.reshape(target, (B, 1, T)).astype(jnp.float32)
    lengths = lengths.astype(jnp.int32)

    kernel = functools.partial(
        _dmol_kernel, tile_t=tile_t, nr_mix=nr_mix,
        num_classes=num_classes, log_scale_min=log_scale_min)

    partial_sums = pl.pallas_call(
        kernel,
        out_shape=jax.ShapeDtypeStruct((B, 1, 128), jnp.float32),
        grid_spec=pltpu.PrefetchScalarGridSpec(
            num_scalar_prefetch=1,
            grid=(B, T // tile_t),
            in_specs=[
                pl.BlockSpec((1, 3, nr_mix, tile_t),
                             lambda b, t, lens: (b, 0, 0, t)),
                pl.BlockSpec((1, 1, tile_t),
                             lambda b, t, lens: (b, 0, t)),
            ],
            out_specs=pl.BlockSpec((1, 1, 128),
                                   lambda b, t, lens: (b, 0, 0)),
            scratch_shapes=[pltpu.VMEM((1, tile_t), jnp.float32)],
        ),
        compiler_params=pltpu.CompilerParams(
            dimension_semantics=("parallel", "arbitrary"),
            vmem_limit_bytes=32 * 1024 * 1024),
    )(lengths, yh4, tgt)

    num = jnp.sum(partial_sums)
    # mask.sum() == sum_b clip(lengths[b], 0, T) -- exact, computed host-side.
    den = jnp.sum(jnp.clip(lengths, 0, T).astype(jnp.float32))
    return num / den


def _reference_loss(y_hat, target, lengths, *, num_classes=256,
                    log_scale_min=-7.0):
    """Pure-JAX reference mirroring the PyTorch module."""
    B, C, T = y_hat.shape
    nr_mix = C // 3
    yh = jnp.transpose(y_hat, (0, 2, 1)).astype(jnp.float32)   # (B, T, C)
    logit_probs = yh[:, :, :nr_mix]
    means = yh[:, :, nr_mix:2 * nr_mix]
    log_scales = jnp.maximum(yh[:, :, 2 * nr_mix:], log_scale_min)
    y = target.astype(jnp.float32)                              # (B, T, 1)

    half_bin = 1.0 / (num_classes - 1)
    centered = y - means
    inv_stdv = jnp.exp(-log_scales)
    plus_in = inv_stdv * (centered + half_bin)
    min_in = inv_stdv * (centered - half_bin)
    cdf_plus = _sigmoid(plus_in)
    cdf_min = _sigmoid(min_in)
    log_cdf_plus = plus_in - _softplus(plus_in)
    log_one_minus_cdf_min = -_softplus(min_in)
    cdf_delta = cdf_plus - cdf_min
    mid_in = inv_stdv * centered
    log_pdf_mid = mid_in - log_scales - 2.0 * _softplus(mid_in)

    inner_inner = jnp.where(cdf_delta > 1e-5,
                            jnp.log(jnp.maximum(cdf_delta, 1e-12)),
                            log_pdf_mid - np.log((num_classes - 1) / 2.0))
    inner = jnp.where(y > 0.999, log_one_minus_cdf_min, inner_inner)
    log_probs = jnp.where(y < -0.999, log_cdf_plus, inner)
    log_probs = log_probs + jax.nn.log_softmax(logit_probs, axis=-1)
    losses = -jax.scipy.special.logsumexp(log_probs, axis=-1)   # (B, T)

    mask = (jnp.arange(T)[None, :] < lengths[:, None]).astype(jnp.float32)
    return jnp.sum(losses * mask) / jnp.sum(mask)


if __name__ == "__main__":
    # Small but representative shapes: B=2, nr_mix=10 (C=30), T=1024.
    B, NR_MIX, T = 2, 10, 1024
    C = 3 * NR_MIX
    key = jax.random.PRNGKey(0)
    k_yhat, k_tgt = jax.random.split(key)

    y_hat = jax.random.normal(k_yhat, (B, C, T), dtype=jnp.float32)
    target = jax.random.uniform(k_tgt, (B, T, 1), dtype=jnp.float32,
                                minval=-1.0, maxval=1.0)
    # exercise the boundary branches of the loss
    target = target.at[0, 0, 0].set(-1.0)
    target = target.at[0, 1, 0].set(1.0)
    # lengths: batch 0 full, batch 1 partial (second tile fully padded -> skip)
    lengths = jnp.array([T, 400], dtype=jnp.int32)

    # TODO(synk): only the `lengths` path of the module is implemented; the
    # explicit arbitrary `mask=` argument path is not exposed by this wrapper.
    loss = discretized_mixture_logistic_masked_loss(
        y_hat, target, lengths, num_classes=256, log_scale_min=-7.0)
    loss = jax.block_until_ready(loss)

    ref = jax.block_until_ready(
        _reference_loss(y_hat, target, lengths,
                        num_classes=256, log_scale_min=-7.0))
    np.testing.assert_allclose(np.asarray(loss), np.asarray(ref),
                               rtol=1e-4, atol=1e-4)
    print("KERNEL_OK")
</pallas_src>

<mosaic_0001>
module attributes {stable_mosaic.version = 11 : i64} {
  func.func @_dmol_kernel(%arg0: i32, %arg1: i32, %arg2: memref<2xi32, #tpu.memory_space<smem>>, %arg3: memref<1x3x10x512xf32, #tpu.memory_space<vmem>>, %arg4: memref<1x1x512xf32, #tpu.memory_space<vmem>>, %arg5: memref<1x1x128xf32, #tpu.memory_space<vmem>>, %arg6: memref<1x512xf32, #tpu.memory_space<vmem>>) attributes {dimension_semantics = [#tpu.dimension_semantics<parallel>, #tpu.dimension_semantics<arbitrary>], iteration_bounds = array<i64: 2, 2>, scalar_prefetch = 1 : i64, scratch_operands = 1 : i64, tpu.core_type = #tpu.core_type<tc>, window_params = [{transform_indices = @transform_0, window_bounds = array<i64: 1, 3, 10, 512>}, {transform_indices = @transform_1, window_bounds = array<i64: 1, 1, 512>}, {transform_indices = @transform_2, window_bounds = array<i64: 1, 1, 128>}]} {
    %c0_i32 = arith.constant 0 : i32
    %0 = arith.cmpi eq, %arg1, %c0_i32 : i32
    %1 = arith.extui %0 : i1 to i32
    %c0_i32_0 = arith.constant 0 : i32
    %2 = arith.cmpi ne, %1, %c0_i32_0 : i32
    scf.if %2 {
      %cst = arith.constant 0.000000e+00 : f32
      %12 = vector.broadcast %cst : f32 to vector<1x512xf32>
      %c0 = arith.constant 0 : index
      %c0_3 = arith.constant 0 : index
      %13 = vector.load %arg6[%c0, %c0_3] : memref<1x512xf32, #tpu.memory_space<vmem>>, vector<1x512xf32>
      tpu.vector_store %arg6[%c0, %c0_3], %12 {strides = array<i32>} : memref<1x512xf32, #tpu.memory_space<vmem>>, vector<1x512xf32>,
    } else {
    }
    %3 = arith.index_cast %arg0 : i32 to index
    %4 = memref.load %arg2[%3] : memref<2xi32, #tpu.memory_space<smem>>
    %c512_i32 = arith.constant 512 : i32
    %5 = arith.muli %arg1, %c512_i32 : i32
    %6 = arith.cmpi slt, %5, %4 : i32
    %7 = arith.extui %6 : i1 to i32
    %c0_i32_1 = arith.constant 0 : i32
    %8 = arith.cmpi ne, %7, %c0_i32_1 : i32
    scf.if %8 {
      %c0 = arith.constant 0 : index
      %c0_3 = arith.constant 0 : index
      %c0_4 = arith.constant 0 : index
      %c0_5 = arith.constant 0 : index
      %12 = vector.load %arg3[%c0, %c0_3, %c0_4, %c0_5] : memref<1x3x10x512xf32, #tpu.memory_space<vmem>>, vector<1x3x10x512xf32>
      %13 = vector.extract_strided_slice %12 {offsets = [0, 0, 0, 0], sizes = [1, 1, 10, 512], strides = [1, 1, 1, 1]} : vector<1x3x10x512xf32> to vector<1x1x10x512xf32>
      %14 = vector.shape_cast %13 : vector<1x1x10x512xf32> to vector<10x512xf32>
      %15 = vector.extract_strided_slice %12 {offsets = [0, 1, 0, 0], sizes = [1, 1, 10, 512], strides = [1, 1, 1, 1]} : vector<1x3x10x512xf32> to vector<1x1x10x512xf32>
      %16 = vector.shape_cast %15 : vector<1x1x10x512xf32> to vector<10x512xf32>
      %17 = vector.extract_strided_slice %12 {offsets = [0, 2, 0, 0], sizes = [1, 1, 10, 512], strides = [1, 1, 1, 1]} : vector<1x3x10x512xf32> to vector<1x1x10x512xf32>
      %18 = vector.shape_cast %17 : vector<1x1x10x512xf32> to vector<10x512xf32>
      %cst = arith.constant -7.000000e+00 : f32
      %19 = vector.broadcast %cst : f32 to vector<10x512xf32>
      %20 = arith.maximumf %18, %19 : vector<10x512xf32>
      %c0_6 = arith.constant 0 : index
      %c0_7 = arith.constant 0 : index
      %c0_8 = arith.constant 0 : index
      %21 = vector.load %arg4[%c0_6, %c0_7, %c0_8] : memref<1x1x512xf32, #tpu.memory_space<vmem>>, vector<1x1x512xf32>
      %22 = vector.shape_cast %21 : vector<1x1x512xf32> to vector<1x512xf32>
      %23 = vector.broadcast %22 : vector<1x512xf32> to vector<10x512xf32>
      %24 = arith.subf %23, %16 : vector<10x512xf32>
      %cst_9 = arith.constant 0.000000e+00 : f32
      %25 = vector.broadcast %cst_9 : f32 to vector<10x512xf32>
      %26 = arith.subf %25, %20 : vector<10x512xf32>
      %27 = math.exp %26 : vector<10x512xf32>
      %cst_10 = arith.constant 0.00392156886 : f32
      %28 = vector.broadcast %cst_10 : f32 to vector<10x512xf32>
      %29 = arith.addf %24, %28 : vector<10x512xf32>
      %30 = arith.mulf %27, %29 : vector<10x512xf32>
      %cst_11 = arith.constant 0.00392156886 : f32
      %31 = vector.broadcast %cst_11 : f32 to vector<10x512xf32>
      %32 = arith.subf %24, %31 : vector<10x512xf32>
      %33 = arith.mulf %27, %32 : vector<10x512xf32>
      %cst_12 = arith.constant 0.000000e+00 : f32
      %34 = vector.broadcast %cst_12 : f32 to vector<10x512xf32>
      %35 = arith.subf %34, %30 : vector<10x512xf32>
      %36 = math.exp %35 : vector<10x512xf32>
      %cst_13 = arith.constant 1.000000e+00 : f32
      %37 = vector.broadcast %cst_13 : f32 to vector<10x512xf32>
      %38 = arith.addf %37, %36 : vector<10x512xf32>
      %cst_14 = arith.constant 1.000000e+00 : f32
      %39 = vector.broadcast %cst_14 : f32 to vector<10x512xf32>
      %40 = arith.divf %39, %38 : vector<10x512xf32>
      %cst_15 = arith.constant 0.000000e+00 : f32
      %41 = vector.broadcast %cst_15 : f32 to vector<10x512xf32>
      %42 = arith.subf %41, %33 : vector<10x512xf32>
      %43 = math.exp %42 : vector<10x512xf32>
      %cst_16 = arith.constant 1.000000e+00 : f32
      %44 = vector.broadcast %cst_16 : f32 to vector<10x512xf32>
      %45 = arith.addf %44, %43 : vector<10x512xf32>
      %cst_17 = arith.constant 1.000000e+00 : f32
      %46 = vector.broadcast %cst_17 : f32 to vector<10x512xf32>
      %47 = arith.divf %46, %45 : vector<10x512xf32>
      %cst_18 = arith.constant 0.000000e+00 : f32
      %48 = vector.broadcast %cst_18 : f32 to vector<10x512xf32>
      %49 = arith.maximumf %30, %48 : vector<10x512xf32>
      %50 = math.absf %30 : vector<10x512xf32>
      %cst_19 = arith.constant 0.000000e+00 : f32
      %51 = vector.broadcast %cst_19 : f32 to vector<10x512xf32>
      %52 = arith.subf %51, %50 : vector<10x512xf32>
      %53 = math.exp %52 : vector<10x512xf32>
      %cst_20 = arith.constant 1.000000e+00 : f32
      %54 = vector.broadcast %cst_20 : f32 to vector<10x512xf32>
      %55 = arith.addf %54, %53 : vector<10x512xf32>
      %56 = math.log %55 : vector<10x512xf32>
      %57 = arith.addf %49, %56 : vector<10x512xf32>
      %58 = arith.subf %30, %57 : vector<10x512xf32>
      %cst_21 = arith.constant 0.000000e+00 : f32
      %59 = vector.broadcast %cst_21 : f32 to vector<10x512xf32>
      %60 = arith.maximumf %33, %59 : vector<10x512xf32>
      %61 = math.absf %33 : vector<10x512xf32>
      %cst_22 = arith.constant 0.000000e+00 : f32
      %62 = vector.broadcast %cst_22 : f32 to vector<10x512xf32>
      %63 = arith.subf %62, %61 : vector<10x512xf32>
      %64 = math.exp %63 : vector<10x512xf32>
      %cst_23 = arith.constant 1.000000e+00 : f32
      %65 = vector.broadcast %cst_23 : f32 to vector<10x512xf32>
      %66 = arith.addf %65, %64 : vector<10x512xf32>
      %67 = math.log %66 : vector<10x512xf32>
      %68 = arith.addf %60, %67 : vector<10x512xf32>
      %cst_24 = arith.constant 0.000000e+00 : f32
      %69 = vector.broadcast %cst_24 : f32 to vector<10x512xf32>
      %70 = arith.subf %69, %68 : vector<10x512xf32>
      %71 = arith.subf %40, %47 : vector<10x512xf32>
      %72 = arith.mulf %27, %24 : vector<10x512xf32>
      %73 = arith.subf %72, %20 : vector<10x512xf32>
      %cst_25 = arith.constant 0.000000e+00 : f32
      %74 = vector.broadcast %cst_25 : f32 to vector<10x512xf32>
      %75 = arith.maximumf %72, %74 : vector<10x512xf32>
      %76 = math.absf %72 : vector<10x512xf32>
      %cst_26 = arith.constant 0.000000e+00 : f32
      %77 = vector.broadcast %cst_26 : f32 to vector<10x512xf32>
      %78 = arith.subf %77, %76 : vector<10x512xf32>
      %79 = math.exp %78 : vector<10x512xf32>
      %cst_27 = arith.constant 1.000000e+00 : f32
      %80 = vector.broadcast %cst_27 : f32 to vector<10x512xf32>
      %81 = arith.addf %80, %79 : vector<10x512xf32>
      %82 = math.log %81 : vector<10x512xf32>
      %83 = arith.addf %75, %82 : vector<10x512xf32>
      %cst_28 = arith.constant 2.000000e+00 : f32
      %84 = vector.broadcast %cst_28 : f32 to vector<10x512xf32>
      %85 = arith.mulf %84, %83 : vector<10x512xf32>
      %86 = arith.subf %73, %85 : vector<10x512xf32>
      %cst_29 = arith.constant 9.99999974E-6 : f32
      %87 = vector.broadcast %cst_29 : f32 to vector<10x512xf32>
      %88 = arith.cmpf ogt, %71, %87 : vector<10x512xf32>
      %cst_30 = arith.constant 9.99999996E-13 : f32
      %89 = vector.broadcast %cst_30 : f32 to vector<10x512xf32>
      %90 = arith.maximumf %71, %89 : vector<10x512xf32>
      %91 = math.log %90 : vector<10x512xf32>
      %cst_31 = arith.constant 4.8481164 : f32
      %92 = vector.broadcast %cst_31 : f32 to vector<10x512xf32>
      %93 = arith.subf %86, %92 : vector<10x512xf32>
      %94 = arith.select %88, %91, %93 : vector<10x512xi1>, vector<10x512xf32>
      %cst_32 = arith.constant 9.990000e-01 : f32
      %95 = vector.broadcast %cst_32 : f32 to vector<1x512xf32>
      %96 = arith.cmpf ogt, %22, %95 : vector<1x512xf32>
      %97 = vector.shape_cast %96 : vector<1x512xi1> to vector<1x512xi1>
      %98 = vector.broadcast %97 : vector<1x512xi1> to vector<10x512xi1>
      %99 = arith.select %98, %70, %94 : vector<10x512xi1>, vector<10x512xf32>
      %cst_33 = arith.constant -9.990000e-01 : f32
      %100 = vector.broadcast %cst_33 : f32 to vector<1x512xf32>
      %101 = arith.cmpf olt, %22, %100 : vector<1x512xf32>
      %102 = vector.shape_cast %101 : vector<1x512xi1> to vector<1x512xi1>
      %103 = vector.broadcast %102 : vector<1x512xi1> to vector<10x512xi1>
      %104 = arith.select %103, %58, %99 : vector<10x512xi1>, vector<10x512xf32>
      %cst_34 = arith.constant dense<0xFF800000> : vector<512xf32>
      %105 = vector.multi_reduction <maximumf>, %14, %cst_34 [0] : vector<10x512xf32> to vector<512xf32>
      %106 = vector.shape_cast %105 : vector<512xf32> to vector<1x512xf32>
      %107 = vector.broadcast %106 : vector<1x512xf32> to vector<10x512xf32>
      %108 = arith.subf %14, %107 : vector<10x512xf32>
      %109 = math.exp %108 : vector<10x512xf32>
      %cst_35 = arith.constant dense<0.000000e+00> : vector<512xf32>
      %110 = vector.multi_reduction <add>, %109, %cst_35 [0] : vector<10x512xf32> to vector<512xf32>
      %111 = vector.shape_cast %110 : vector<512xf32> to vector<1x512xf32>
      %112 = math.log %111 : vector<1x512xf32>
      %113 = arith.addf %106, %112 : vector<1x512xf32>
      %114 = vector.broadcast %113 : vector<1x512xf32> to vector<10x512xf32>
      %115 = arith.subf %14, %114 : vector<10x512xf32>
      %116 = arith.addf %104, %115 : vector<10x512xf32>
      %cst_36 = arith.constant dense<0xFF800000> : vector<512xf32>
      %117 = vector.multi_reduction <maximumf>, %116, %cst_36 [0] : vector<10x512xf32> to vector<512xf32>
      %118 = vector.shape_cast %117 : vector<512xf32> to vector<1x512xf32>
      %119 = vector.broadcast %118 : vector<1x512xf32> to vector<10x512xf32>
      %120 = arith.subf %116, %119 : vector<10x512xf32>
      %121 = math.exp %120 : vector<10x512xf32>
      %cst_37 = arith.constant dense<0.000000e+00> : vector<512xf32>
      %122 = vector.multi_reduction <add>, %121, %cst_37 [0] : vector<10x512xf32> to vector<512xf32>
      %123 = vector.shape_cast %122 : vector<512xf32> to vector<1x512xf32>
      %124 = math.log %123 : vector<1x512xf32>
      %125 = arith.addf %118, %124 : vector<1x512xf32>
      %cst_38 = arith.constant 0.000000e+00 : f32
      %126 = vector.broadcast %cst_38 : f32 to vector<1x512xf32>
      %127 = arith.subf %126, %125 : vector<1x512xf32>
      %128 = tpu.iota {dimensions = array<i32: 1>} : vector<1x512xi32>
      %c512_i32_39 = arith.constant 512 : i32
      %129 = arith.muli %arg1, %c512_i32_39 : i32
      %130 = vector.broadcast %129 : i32 to vector<1x512xi32>
      %131 = arith.addi %128, %130 : vector<1x512xi32>
      %132 = vector.broadcast %4 : i32 to vector<1x512xi32>
      %133 = arith.cmpi slt, %131, %132 : vector<1x512xi32>
      %134 = arith.extui %133 : vector<1x512xi1> to vector<1x512xi32>
      %135 = arith.sitofp %134 : vector<1x512xi32> to vector<1x512xf32>
      %c0_40 = arith.constant 0 : index
      %c0_41 = arith.constant 0 : index
      %136 = vector.load %arg6[%c0_40, %c0_41] : memref<1x512xf32, #tpu.memory_space<vmem>>, vector<1x512xf32>
      %137 = arith.mulf %127, %135 : vector<1x512xf32>
      %138 = arith.addf %136, %137 : vector<1x512xf32>
      %c0_42 = arith.constant 0 : index
      %c0_43 = arith.constant 0 : index
      %139 = vector.load %arg6[%c0_42, %c0_43] : memref<1x512xf32, #tpu.memory_space<vmem>>, vector<1x512xf32>
      tpu.vector_store %arg6[%c0_42, %c0_43], %138 {strides = array<i32>} : memref<1x512xf32, #tpu.memory_space<vmem>>, vector<1x512xf32>,
    } else {
    }
    %c1_i32 = arith.constant 1 : i32
    %9 = arith.cmpi eq, %arg1, %c1_i32 : i32
    %10 = arith.extui %9 : i1 to i32
    %c0_i32_2 = arith.constant 0 : i32
    %11 = arith.cmpi ne, %10, %c0_i32_2 : i32
    scf.if %11 {
      %c0 = arith.constant 0 : index
      %c0_3 = arith.constant 0 : index
      %12 = vector.load %arg6[%c0, %c0_3] : memref<1x512xf32, #tpu.memory_space<vmem>>, vector<1x128xf32>
      %c0_4 = arith.constant 0 : index
      %c128 = arith.constant 128 : index
      %13 = vector.load %arg6[%c0_4, %c128] : memref<1x512xf32, #tpu.memory_space<vmem>>, vector<1x128xf32>
      %14 = arith.addf %12, %13 : vector<1x128xf32>
      %c0_5 = arith.constant 0 : index
      %c256 = arith.constant 256 : index
      %15 = vector.load %arg6[%c0_5, %c256] : memref<1x512xf32, #tpu.memory_space<vmem>>, vector<1x128xf32>
      %16 = arith.addf %14, %15 : vector<1x128xf32>
      %c0_6 = arith.constant 0 : index
      %c384 = arith.constant 384 : index
      %17 = vector.load %arg6[%c0_6, %c384] : memref<1x512xf32, #tpu.memory_space<vmem>>, vector<1x128xf32>
      %18 = arith.addf %16, %17 : vector<1x128xf32>
      %19 = vector.shape_cast %18 : vector<1x128xf32> to vector<1x1x128xf32>
      %c0_7 = arith.constant 0 : index
      %c0_8 = arith.constant 0 : index
      %c0_9 = arith.constant 0 : index
      %20 = vector.load %arg5[%c0_7, %c0_8, %c0_9] : memref<1x1x128xf32, #tpu.memory_space<vmem>>, vector<1x1x128xf32>
      tpu.vector_store %arg5[%c0_7, %c0_8, %c0_9], %19 {strides = array<i32>} : memref<1x1x128xf32, #tpu.memory_space<vmem>>, vector<1x1x128xf32>,
    } else {
    }
    return
  }
  func.func @transform_0(%arg0: i32, %arg1: i32, %arg2: memref<2xi32, #tpu.memory_space<smem>>) -> (i32, i32, i32, i32) {
    %c0_i32 = arith.constant 0 : i32
    %c0_i32_0 = arith.constant 0 : i32
    %c0_i32_1 = arith.constant 0 : i32
    return %arg0, %c0_i32, %c0_i32_0, %arg1 : i32, i32, i32, i32
  }
  func.func @transform_1(%arg0: i32, %arg1: i32, %arg2: memref<2xi32, #tpu.memory_space<smem>>) -> (i32, i32, i32) {
    %c0_i32 = arith.constant 0 : i32
    %c0_i32_0 = arith.constant 0 : i32
    return %arg0, %c0_i32, %arg1 : i32, i32, i32
  }
  func.func @transform_2(%arg0: i32, %arg1: i32, %arg2: memref<2xi32, #tpu.memory_space<smem>>) -> (i32, i32, i32) {
    %c0_i32 = arith.constant 0 : i32
    %c0_i32_0 = arith.constant 0 : i32
    %c0_i32_1 = arith.constant 0 : i32
    return %arg0, %c0_i32, %c0_i32_0 : i32, i32, i32
  }
}

</mosaic_0001>

<llo_original>
// kernel: tpu_custom_call.1
$region0: #{tpu_custom_call.1}
  #allocation0 [shape = 'u32[]', space=smem, size = 0x4, offset = 0x4, fixed_abs, tag = 'smem constant byte address 0x4 - core index']
  #allocation1 [shape = 'u32[144,128]{1,0:T(1,128)}', space=vmem, size = 0x12000, scoped, tag = 'internal scratch']
  #allocation2 [shape = 'f32[1,512]{1,0:T(1,128)}', space=vmem, size = 0x800, scoped, tag = 'scratch operand']
  #allocation3 [shape = 's32[1]{0}', space=sflag, size = 0x4, scoped, tag = 'scoped memory for tpu_custom_call.1']
  #allocation4 [shape = 'u8[512]{0}', space=smem, size = 0x200, scoped, tag = 'prefetched SMEM operand 0']
  %s0 = inlined_call_operand.vmem [shape: s32[2], index: 0, kind: input, shape index: {}]
  %s1 = inlined_call_operand.vmem [shape: f32[2,3,10,1024], index: 1, kind: input, shape index: {}]
  %s2 = inlined_call_operand.vmem [shape: f32[2,1,1024], index: 2, kind: input, shape index: {}]
  %s3 = inlined_call_operand.hbm [shape: f32[2,1,128], index: 3, kind: output, shape index: {}]
  %s4 = sld [smem:[#allocation0]]
  $region76: #{tpu_custom_call.1} parent=0
    _
  %s6 = ssub.s32 1, %s4
  %s7 = scalar_select 0, %s6, %s4
  %s8 = sshll.u32 %s0, 4
  %s9 = int_to_ptr.vmem [resolvable:$true] %s8
  %11 = dma.vmem_to_smem %s9, 16, [#allocation4], [#allocation3]
  %12 = dma.done [#allocation3], 16
  %13 = sfence
  $region1: #{tpu_custom_call.1} parent=0
    #allocation5 [shape = 'u8[196608]{0}', space=vmem, size = 0x30000, scoped, tag = 'input window, operand 1']
    #allocation6 [shape = 'u8[1024]{0}', space=vmem, size = 0x400, scoped, tag = 'output window, operand 0']
    #allocation7 [shape = 's32[2]{0}', space=sflag, size = 0x8, scoped, tag = 'scoped memory for tpu_custom_call.1']
    %14 = vsyncpa [#allocation7], 0
    %s15 = scalar_lea.sflag [#allocation7], 1
    %16 = vsyncpa %s15, 0
    loop: start=0, step=1, limit=6
    $region2: #{tpu_custom_call.1} parent=1 // loop_pre_header
      _
    $region3: #{tpu_custom_call.1} parent=1 // loop_header
      %s18 = sphi 0, %s22
      %p19 = scmp.ge.s32.totalorder %s18, 6
      %s25 = sphi 0, %s37
      %s26 = sphi 0, %s33
      %s27 = sphi 0, %s25
      %s28 = sphi 0, %s26
      %s29 = sphi 0, %s27
      %s30 = sphi 0, %s28
      %s42 = sphi 0, %s44
      %s45 = sphi 0, %s42
      %s46 = sphi 0, %s45
      %s62 = sphi 0, %s46
      %s70 = sphi 0, %s72
      %s73 = sphi 0, %s70
      %s74 = sphi 0, %s73
      %s90 = sphi 0, %s74
      %s96 = sphi 0, %s98
      %s99 = sphi 0, %s96
      %s100 = sphi 0, %s99
      %s116 = sphi 0, %s100
    $region4: #{tpu_custom_call.1} parent=1 // loop_header_branch
      %21 = sbr.rel (%p19) target = $region8
    $region5: #{tpu_custom_call.1} parent=1 // loop_body
      %s23 = ssub.s32 %s18, 1
      %s24 = ssub.s32 %s18, 2
      %s31 = sadd.s32 1, %s26
      %p32 = scmp.ge.s32.totalorder %s31, 2
      %s33 = scalar_select %p32, 0, %s31
      %s34 = sadd.s32 1, %s25
      %s35 = scalar_select %p32, %s34, %s25
      %p36 = scmp.ge.s32.totalorder %s35, 2
      %s37 = scalar_select %p36, 0, %s35
      %s38 = ssub.s32 %s25, %s37
      %s39 = ssub.s32 %s26, %s33
      %s40 = sor.u32 %s38, %s39
      %p41 = scmp.eq.s32.totalorder %s40, 0
      %s43 = sadd.s32 %s42, 1
      %s44 = scalar_select %p41, %s42, %s43
      %p47 = pneg %p41
      %p48 = scmp.eq.s32.totalorder %s18, 3
      %p49 = por %p47, %p48
      %p50 = scmp.ne.s32.totalorder %s42, %s45
      %p51 = scmp.eq.s32.totalorder %s18, 0
      %p52 = por %p50, %p51
      %p53 = scmp.ne.s32.totalorder %s42, %s45
      %p54 = scmp.eq.s32.totalorder %s23, 3
      %p55 = por %p53, %p54
      %p56 = scmp.ne.s32.totalorder %s45, %s46
      %p57 = scmp.eq.s32.totalorder %s23, 0
      %p58 = por %p56, %p57
      %p59 = scmp.ne.s32.totalorder %s45, %s46
      %p60 = scmp.eq.s32.totalorder %s24, 3
      %p61 = por %p59, %p60
      %p63 = scmp.ne.s32.totalorder %s46, %s62
      %p64 = scmp.eq.s32.totalorder %s24, 0
      %p65 = por %p63, %p64
      %s66 = ssub.s32 %s25, %s37
      %s67 = ssub.s32 %s26, %s33
      %s68 = sor.u32 %s66, %s67
      %p69 = scmp.eq.s32.totalorder %s68, 0
      %s71 = sadd.s32 %s70, 1
      %s72 = scalar_select %p69, %s70, %s71
      %p75 = pneg %p69
      %p76 = scmp.eq.s32.totalorder %s18, 3
      %p77 = por %p75, %p76
      %p78 = scmp.ne.s32.totalorder %s70, %s73
      %p79 = scmp.eq.s32.totalorder %s18, 0
      %p80 = por %p78, %p79
      %p81 = scmp.ne.s32.totalorder %s70, %s73
      %p82 = scmp.eq.s32.totalorder %s23, 3
      %p83 = por %p81, %p82
      %p84 = scmp.ne.s32.totalorder %s73, %s74
      %p85 = scmp.eq.s32.totalorder %s23, 0
      %p86 = por %p84, %p85
      %p87 = scmp.ne.s32.totalorder %s73, %s74
      %p88 = scmp.eq.s32.totalorder %s24, 3
      %p89 = por %p87, %p88
      %p91 = scmp.ne.s32.totalorder %s74, %s90
      %p92 = scmp.eq.s32.totalorder %s24, 0
      %p93 = por %p91, %p92
      %s94 = ssub.s32 %s25, %s37
      %p95 = scmp.eq.s32.totalorder %s94, 0
      %s97 = sadd.s32 %s96, 1
      %s98 = scalar_select %p95, %s96, %s97
      %p101 = pneg %p95
      %p102 = scmp.eq.s32.totalorder %s18, 3
      %p103 = por %p101, %p102
      %p104 = scmp.ne.s32.totalorder %s96, %s99
      %p105 = scmp.eq.s32.totalorder %s18, 0
      %p106 = por %p104, %p105
      %p107 = scmp.ne.s32.totalorder %s96, %s99
      %p108 = scmp.eq.s32.totalorder %s23, 3
      %p109 = por %p107, %p108
      %p110 = scmp.ne.s32.totalorder %s99, %s100
      %p111 = scmp.eq.s32.totalorder %s23, 0
      %p112 = por %p110, %p111
      %p113 = scmp.ne.s32.totalorder %s99, %s100
      %p114 = scmp.eq.s32.totalorder %s24, 3
      %p115 = por %p113, %p114
      %p117 = scmp.ne.s32.totalorder %s100, %s116
      %p118 = scmp.eq.s32.totalorder %s24, 0
      %p119 = por %p117, %p118
      %p120 = scmp.le.s32.totalorder 1, %s18
      %p121 = scmp.lt.s32.totalorder %s18, 5
      %p122 = pnand %p120, %p121
      %p123 = pneg %p122
      // Predicated region
      $region9: #{tpu_custom_call.1} parent=5 // pred_check
        _
      $region10: #{tpu_custom_call.1} parent=5 // pred_check_branch
        %125 = sbr.rel (%p122) target = $region12
      $region11: #{tpu_custom_call.1} parent=5 // pred_region
        %s126 = ssub.s32 %s18, 1
      $region12: #{tpu_custom_call.1} parent=5 // pred_fallthru
        _
      %p127 = scmp.lt.s32.totalorder %s18, 4
      // Predicated region
      $region13: #{tpu_custom_call.1} parent=5 // pred_check
        %p128 = pneg %p127
      $region14: #{tpu_custom_call.1} parent=5 // pred_check_branch
        %130 = sbr.rel (%p128) target = $region16
      $region15: #{tpu_custom_call.1} parent=5 // pred_region
        // Predicated region
        $region17: #{tpu_custom_call.1} parent=15 // pred_check
          %p131 = pneg %p52
        $region18: #{tpu_custom_call.1} parent=15 // pred_check_branch
          %133 = sbr.rel (%p131) target = $region20
        $region19: #{tpu_custom_call.1} parent=15 // pred_region
          %s134 = sand.u32 %s42, 1
          %s135 = sand.u32 %s42, 1
          %s136 = smul.addr %s135, 192
          %s137 = scalar_lea.vmem [#allocation5], %s136
          %s138 = smul.u32 4, %s26
          %s139 = smul.addr %s25, 48
          %s140 = sadd.s32 %s138, %s139
          %s141 = smul.addr %s140, 8
          %s142 = scalar_lea.vmem %s1, %s141
          // Predicated region
          $region21: #{tpu_custom_call.1} parent=19 // pred_check
            _
          $region22: #{tpu_custom_call.1} parent=19 // pred_check_branch
            %144 = sbr.rel (0) target = $region24
          $region23: #{tpu_custom_call.1} parent=19 // pred_region
            // Predicated region
            $region25: #{tpu_custom_call.1} parent=23 // pred_check
              _
            $region26: #{tpu_custom_call.1} parent=23 // pred_check_branch
              %146 = sbr.rel (0) target = $region28
            $region27: #{tpu_custom_call.1} parent=23 // pred_region
              loop: start=0, step=1, limit=1
              $region29: #{tpu_custom_call.1} parent=27 // loop_pre_header
                _
              $region30: #{tpu_custom_call.1} parent=27 // loop_header
                %s148 = sphi 0, %s152
                %p149 = scmp.ge.s32.totalorder %s148, 1
                %s153 = sphi %s142, %s142
                %s154 = sphi %s137, %s137
              $region31: #{tpu_custom_call.1} parent=27 // loop_header_branch
                %151 = sbr.rel (%p149) target = $region35
              $region32: #{tpu_custom_call.1} parent=27 // loop_body
                %v155 = vld [vmem:[%s153] sm:$0xff]
                %156 = vst [vmem:[%s154] sm:$0xff] %v155
                %v157 = vld [vmem:[%s153 + $0x8] sm:$0xff]
                %158 = vst [vmem:[%s154 + $0x8] sm:$0xff] %v157
                %v159 = vld [vmem:[%s153 + $0x10] sm:$0xff]
                %160 = vst [vmem:[%s154 + $0x10] sm:$0xff] %v159
                %v161 = vld [vmem:[%s153 + $0x18] sm:$0xff]
                %162 = vst [vmem:[%s154 + $0x18] sm:$0xff] %v161
                %v163 = vld [vmem:[%s153 + $0x40] sm:$0xff]
                %164 = vst [vmem:[%s154 + $0x20] sm:$0xff] %v163
                %v165 = vld [vmem:[%s153 + $0x48] sm:$0xff]
                %166 = vst [vmem:[%s154 + $0x28] sm:$0xff] %v165
                %v167 = vld [vmem:[%s153 + $0x50] sm:$0xff]
                %168 = vst [vmem:[%s154 + $0x30] sm:$0xff] %v167
                %v169 = vld [vmem:[%s153 + $0x58] sm:$0xff]
                %170 = vst [vmem:[%s154 + $0x38] sm:$0xff] %v169
                %v171 = vld [vmem:[%s153 + $0x80] sm:$0xff]
                %172 = vst [vmem:[%s154 + $0x40] sm:$0xff] %v171
                %v173 = vld [vmem:[%s153 + $0x88] sm:$0xff]
                %174 = vst [vmem:[%s154 + $0x48] sm:$0xff] %v173
                %v175 = vld [vmem:[%s153 + $0x90] sm:$0xff]
                %176 = vst [vmem:[%s154 + $0x50] sm:$0xff] %v175
                %v177 = vld [vmem:[%s153 + $0x98] sm:$0xff]
                %178 = vst [vmem:[%s154 + $0x58] sm:$0xff] %v177
                %v179 = vld [vmem:[%s153 + $0xc0] sm:$0xff]
                %180 = vst [vmem:[%s154 + $0x60] sm:$0xff] %v179
                %v181 = vld [vmem:[%s153 + $0xc8] sm:$0xff]
                %182 = vst [vmem:[%s154 + $0x68] sm:$0xff] %v181
                %v183 = vld [vmem:[%s153 + $0xd0] sm:$0xff]
                %184 = vst [vmem:[%s154 + $0x70] sm:$0xff] %v183
                %v185 = vld [vmem:[%s153 + $0xd8] sm:$0xff]
                %186 = vst [vmem:[%s154 + $0x78] sm:$0xff] %v185
                %v187 = vld [vmem:[%s153 + $0x100] sm:$0xff]
                %188 = vst [vmem:[%s154 + $0x80] sm:$0xff] %v187
                %v189 = vld [vmem:[%s153 + $0x108] sm:$0xff]
                %190 = vst [vmem:[%s154 + $0x88] sm:$0xff] %v189
                %v191 = vld [vmem:[%s153 + $0x110] sm:$0xff]
                %192 = vst [vmem:[%s154 + $0x90] sm:$0xff] %v191
                %v193 = vld [vmem:[%s153 + $0x118] sm:$0xff]
                %194 = vst [vmem:[%s154 + $0x98] sm:$0xff] %v193
                %v195 = vld [vmem:[%s153 + $0x140] sm:$0xff]
                %196 = vst [vmem:[%s154 + $0xa0] sm:$0xff] %v195
                %v197 = vld [vmem:[%s153 + $0x148] sm:$0xff]
                %198 = vst [vmem:[%s154 + $0xa8] sm:$0xff] %v197
                %v199 = vld [vmem:[%s153 + $0x150] sm:$0xff]
                %200 = vst [vmem:[%s154 + $0xb0] sm:$0xff] %v199
                %v201 = vld [vmem:[%s153 + $0x158] sm:$0xff]
                %202 = vst [vmem:[%s154 + $0xb8] sm:$0xff] %v201
              $region33: #{tpu_custom_call.1} parent=27 // loop_footer
                %s152 = sadd.s32 1, %s148
              $region34: #{tpu_custom_call.1} parent=27 // loop_footer_branch
                %147 = sbr.rel target = $region30
              $region35: #{tpu_custom_call.1} parent=27 // loop_exit
                _
            $region28: #{tpu_custom_call.1} parent=23 // pred_fallthru
              _
            // Predicated region
            $region36: #{tpu_custom_call.1} parent=23 // pred_check
              _
            $region37: #{tpu_custom_call.1} parent=23 // pred_check_branch
              %204 = sbr.rel target = $region39
            $region38: #{tpu_custom_call.1} parent=23 // pred_region
              _
            $region39: #{tpu_custom_call.1} parent=23 // pred_fallthru
              _
          $region24: #{tpu_custom_call.1} parent=19 // pred_fallthru
            _
          %205 = vnop
        $region20: #{tpu_custom_call.1} parent=15 // pred_fallthru
          _
        // Predicated region
        $region40: #{tpu_custom_call.1} parent=15 // pred_check
          %p206 = pneg %p80
        $region41: #{tpu_custom_call.1} parent=15 // pred_check_branch
          %208 = sbr.rel (%p206) target = $region43
        $region42: #{tpu_custom_call.1} parent=15 // pred_region
          %s209 = smul.u32 4, %s26
          %p210 = scmp.lt.s32.totalorder %s25, 1
          %s211 = scalar_select %p210, %s25, 1
          %p212 = scmp.lt.s32.totalorder %s209, 7
          %s213 = scalar_select %p212, %s209, 7
          %s214 = smul.addr %s211, 8
          %s215 = sadd.s32 %s213, %s214
          %s216 = scalar_lea.vmem %s2, %s215
          %s217 = smul.u32 4, %s26
        $region43: #{tpu_custom_call.1} parent=15 // pred_fallthru
          _
      $region16: #{tpu_custom_call.1} parent=5 // pred_fallthru
        _
      %p218 = scmp.le.s32.totalorder 1, %s18
      %p219 = scmp.lt.s32.totalorder %s18, 5
      %p220 = pnand %p218, %p219
      %p221 = pneg %p220
      // Predicated region
      $region44: #{tpu_custom_call.1} parent=5 // pred_check
        _
      $region45: #{tpu_custom_call.1} parent=5 // pred_check_branch
        %223 = sbr.rel (%p220) target = $region47
      $region46: #{tpu_custom_call.1} parent=5 // pred_region
        %s224 = ssub.s32 %s18, 1
        %s225 = sand.u32 %s45, 1
        %s226 = sand.u32 %s45, 1
        %s227 = smul.addr %s226, 192
        %s228 = scalar_lea.vmem [#allocation5], %s227
        // Predicated region
        $region48: #{tpu_custom_call.1} parent=46 // pred_check
          %p229 = pneg %p58
        $region49: #{tpu_custom_call.1} parent=46 // pred_check_branch
          %231 = sbr.rel (%p229) target = $region51
        $region50: #{tpu_custom_call.1} parent=46 // pred_region
          _
        $region51: #{tpu_custom_call.1} parent=46 // pred_fallthru
          _
        %s232 = sand.u32 %s45, 1
        %s233 = sand.u32 %s45, 1
        %s234 = smul.addr %s233, 192
        %s235 = scalar_lea.vmem [#allocation5], %s234
        %p236 = pneg %p58
        %p237 = pneg %p55
        %s238 = smul.u32 4, %s28
        %p239 = scmp.lt.s32.totalorder %s27, 1
        %s240 = scalar_select %p239, %s27, 1
        %p241 = scmp.lt.s32.totalorder %s238, 7
        %s242 = scalar_select %p241, %s238, 7
        %s243 = smul.addr %s240, 8
        %s244 = sadd.s32 %s242, %s243
        %s245 = scalar_lea.vmem %s2, %s244
        %p246 = pneg %p86
        %p247 = pneg %p83
        %p248 = pneg %p112
        %p249 = pneg %p109
        %s250 = sand.u32 %s99, 1
        %s251 = scalar_lea.sflag [#allocation7], %s250
        %s252 = sand.u32 %s99, 1
        %s253 = scalar_lea.vmem [#allocation6], %s252
        %s254 = smul.u32 4, %s28
        %s255 = smul.u32 4, %s28
        %p256 = scmp.lt.s32.totalorder %s27, 1
        %s257 = scalar_select %p256, %s27, 1
        %p258 = scmp.lt.s32.totalorder %s255, 7
        %s259 = scalar_select %p258, %s255, 7
        %s260 = smul.addr %s257, 8
        %s261 = sadd.s32 %s259, %s260
        %s262 = scalar_lea.vmem %s2, %s261
        %s263 = smul.u32 4, %s28
        %p264 = scmp.eq.s32.totalorder %s28, 0
        // Predicated region
        $region52: #{tpu_custom_call.1} parent=46 // pred_check
          %p265 = pneg %p264
        $region53: #{tpu_custom_call.1} parent=46 // pred_check_branch
          %267 = sbr.rel (%p265) target = $region55
        $region54: #{tpu_custom_call.1} parent=46 // pred_region
          %v268 = vlaneseq
          %vm269 = vcmp.ge.s32.totalorder %v268, 0
          %vm270 = vcmp.lt.s32.totalorder %v268, 512
          %vm271 = vmand %vm269, %vm270
          %272 = vst.msk [vmem:[#allocation2] sm:$0xf] %vm271, 0.0
        $region55: #{tpu_custom_call.1} parent=46 // pred_fallthru
          _
        %s273 = sld [smem:[#allocation4 + %s27]]
        %s274 = smul.u32 %s28, 512
        %p275 = scmp.lt.s32.totalorder %s274, %s273
        // Predicated region
        $region56: #{tpu_custom_call.1} parent=46 // pred_check
          %p276 = pneg %p275
        $region57: #{tpu_custom_call.1} parent=46 // pred_check_branch
          %278 = sbr.rel (%p276) target = $region59
        $region58: #{tpu_custom_call.1} parent=46 // pred_region
          %v279 = vld [vmem:[%s228] sm:$0xff]
          %v280 = vld [vmem:[%s228 + $0x8] sm:$0xff]
          %v281 = vld [vmem:[%s228 + $0x10] sm:$0xff]
          %v282 = vld [vmem:[%s228 + $0x18] sm:$0xff]
          %v283 = vld [vmem:[%s228 + $0x20] sm:$0x3]
          %v284 = vld [vmem:[%s228 + $0x28] sm:$0x3]
          %v285 = vld [vmem:[%s228 + $0x30] sm:$0x3]
          %v286 = vld [vmem:[%s228 + $0x38] sm:$0x3]
          %v287 = vld [vmem:[%s228 + $0x40] sm:$0xff]
          %v288 = vld [vmem:[%s228 + $0x48] sm:$0xff]
          %v289 = vld [vmem:[%s228 + $0x50] sm:$0xff]
          %v290 = vld [vmem:[%s228 + $0x58] sm:$0xff]
          %v291 = vld [vmem:[%s228 + $0x60] sm:$0x3]
          %v292 = vld [vmem:[%s228 + $0x68] sm:$0x3]
          %v293 = vld [vmem:[%s228 + $0x70] sm:$0x3]
          %v294 = vld [vmem:[%s228 + $0x78] sm:$0x3]
          %v295 = vld [vmem:[%s228 + $0x80] sm:$0xff]
          %v296 = vld [vmem:[%s228 + $0x88] sm:$0xff]
          %v297 = vld [vmem:[%s228 + $0x90] sm:$0xff]
          %v298 = vld [vmem:[%s228 + $0x98] sm:$0xff]
          %v299 = vld [vmem:[%s228 + $0xa0] sm:$0x3]
          %v300 = vld [vmem:[%s228 + $0xa8] sm:$0x3]
          %v301 = vld [vmem:[%s228 + $0xb0] sm:$0x3]
          %v302 = vld [vmem:[%s228 + $0xb8] sm:$0x3]
          %v303 = vmax.f32 %v295, -7.0
          %v304 = vmax.f32 %v296, -7.0
          %v305 = vmax.f32 %v297, -7.0
          %v306 = vmax.f32 %v298, -7.0
          %v307 = vmax.f32 %v299, -7.0
          %v308 = vmax.f32 %v300, -7.0
          %v309 = vmax.f32 %v301, -7.0
          %v310 = vmax.f32 %v302, -7.0
          %v311 = vld [vmem:[%s262] sm:$0xf]
          %v313 = vlaneseq
          %v314 = vshrl.u32 %v313, 7
          %v315 = vsub.s32 0, %v314
          %v316 = vrot.slane %v311, %v315
          %v317 = vlaneseq
          %v318 = vshrl.u32 %v317, 7
          %v319 = vsub.s32 1, %v318
          %v320 = vrot.slane %v311, %v319
          %v321 = vlaneseq
          %v322 = vshrl.u32 %v321, 7
          %v323 = vsub.s32 2, %v322
          %v324 = vrot.slane %v311, %v323
          %v325 = vlaneseq
          %v326 = vshrl.u32 %v325, 7
          %v327 = vsub.s32 3, %v326
          %v328 = vrot.slane %v311, %v327
          %v333 = vsub.f32 %v316, %v287
          %v334 = vsub.f32 %v320, %v288
          %v335 = vsub.f32 %v324, %v289
          %v336 = vsub.f32 %v328, %v290
          %v337 = vsub.f32 %v316, %v291
          %v338 = vsub.f32 %v320, %v292
          %v339 = vsub.f32 %v324, %v293
          %v340 = vsub.f32 %v328, %v294
          %v341 = vsub.f32 0.0, %v303
          %v342 = vsub.f32 0.0, %v304
          %v343 = vsub.f32 0.0, %v305
          %v344 = vsub.f32 0.0, %v306
          %v345 = vsub.f32 0.0, %v307
          %v346 = vsub.f32 0.0, %v308
          %v347 = vsub.f32 0.0, %v309
          %v348 = vsub.f32 0.0, %v310
          %v349 = vmul.f32 %v341, 1.442695
          %v350 = vpow.pop %v349
          %v351 = vmul.f32 %v342, 1.442695
          %v352 = vpow.pop %v351
          %v353 = vmul.f32 %v343, 1.442695
          %v354 = vpow.pop %v353
          %v355 = vmul.f32 %v344, 1.442695
          %v356 = vpow.pop %v355
          %v357 = vmul.f32 %v345, 1.442695
          %v358 = vpow.pop %v357
          %v359 = vmul.f32 %v346, 1.442695
          %v360 = vpow.pop %v359
          %v361 = vmul.f32 %v347, 1.442695
          %v362 = vpow.pop %v361
          %v363 = vmul.f32 %v348, 1.442695
          %v364 = vpow.pop %v363
          %v365 = vadd.f32 %v333, 0.003921569
          %v366 = vadd.f32 %v334, 0.003921569
          %v367 = vadd.f32 %v335, 0.003921569
          %v368 = vadd.f32 %v336, 0.003921569
          %v369 = vadd.f32 %v337, 0.003921569
          %v370 = vadd.f32 %v338, 0.003921569
          %v371 = vadd.f32 %v339, 0.003921569
          %v372 = vadd.f32 %v340, 0.003921569
          %v373 = vmul.f32 %v350, %v365
          %v374 = vmul.f32 %v352, %v366
          %v375 = vmul.f32 %v354, %v367
          %v376 = vmul.f32 %v356, %v368
          %v377 = vmul.f32 %v358, %v369
          %v378 = vmul.f32 %v360, %v370
          %v379 = vmul.f32 %v362, %v371
          %v380 = vmul.f32 %v364, %v372
          %v381 = vsub.f32 %v333, 0.003921569
          %v382 = vsub.f32 %v334, 0.003921569
          %v383 = vsub.f32 %v335, 0.003921569
          %v384 = vsub.f32 %v336, 0.003921569
          %v385 = vsub.f32 %v337, 0.003921569
          %v386 = vsub.f32 %v338, 0.003921569
          %v387 = vsub.f32 %v339, 0.003921569
          %v388 = vsub.f32 %v340, 0.003921569
          %v389 = vmul.f32 %v350, %v381
          %v390 = vmul.f32 %v352, %v382
          %v391 = vmul.f32 %v354, %v383
          %v392 = vmul.f32 %v356, %v384
          %v393 = vmul.f32 %v358, %v385
          %v394 = vmul.f32 %v360, %v386
          %v395 = vmul.f32 %v362, %v387
          %v396 = vmul.f32 %v364, %v388
          %v397 = vsub.f32 0.0, %v373
          %v398 = vsub.f32 0.0, %v374
          %v399 = vsub.f32 0.0, %v375
          %v400 = vsub.f32 0.0, %v376
          %v401 = vsub.f32 0.0, %v377
          %v402 = vsub.f32 0.0, %v378
          %v403 = vsub.f32 0.0, %v379
          %v404 = vsub.f32 0.0, %v380
          %v405 = vmul.f32 %v397, 1.442695
          %v406 = vpow.pop %v405
          %v407 = vmul.f32 %v398, 1.442695
          %v408 = vpow.pop %v407
          %v409 = vmul.f32 %v399, 1.442695
          %v410 = vpow.pop %v409
          %v411 = vmul.f32 %v400, 1.442695
          %v412 = vpow.pop %v411
          %v413 = vmul.f32 %v401, 1.442695
          %v414 = vpow.pop %v413
          %v415 = vmul.f32 %v402, 1.442695
          %v416 = vpow.pop %v415
          %v417 = vmul.f32 %v403, 1.442695
          %v418 = vpow.pop %v417
          %v419 = vmul.f32 %v404, 1.442695
          %v420 = vpow.pop %v419
          %v421 = vadd.f32 %v406, 1.0
          %v422 = vadd.f32 %v408, 1.0
          %v423 = vadd.f32 %v410, 1.0
          %v424 = vadd.f32 %v412, 1.0
          %v425 = vadd.f32 %v414, 1.0
          %v426 = vadd.f32 %v416, 1.0
          %v427 = vadd.f32 %v418, 1.0
          %v428 = vadd.f32 %v420, 1.0
          %v429 = vrcp.pop %v421
          %v430 = vmul.f32 1.0, %v429
          %v431 = vrcp.pop %v422
          %v432 = vmul.f32 1.0, %v431
          %v433 = vrcp.pop %v423
          %v434 = vmul.f32 1.0, %v433
          %v435 = vrcp.pop %v424
          %v436 = vmul.f32 1.0, %v435
          %v437 = vrcp.pop %v425
          %v438 = vmul.f32 1.0, %v437
          %v439 = vrcp.pop %v426
          %v440 = vmul.f32 1.0, %v439
          %v441 = vrcp.pop %v427
          %v442 = vmul.f32 1.0, %v441
          %v443 = vrcp.pop %v428
          %v444 = vmul.f32 1.0, %v443
          %v445 = vsub.f32 0.0, %v389
          %v446 = vsub.f32 0.0, %v390
          %v447 = vsub.f32 0.0, %v391
          %v448 = vsub.f32 0.0, %v392
          %v449 = vsub.f32 0.0, %v393
          %v450 = vsub.f32 0.0, %v394
          %v451 = vsub.f32 0.0, %v395
          %v452 = vsub.f32 0.0, %v396
          %v453 = vmul.f32 %v445, 1.442695
          %v454 = vpow.pop %v453
          %v455 = vmul.f32 %v446, 1.442695
          %v456 = vpow.pop %v455
          %v457 = vmul.f32 %v447, 1.442695
          %v458 = vpow.pop %v457
          %v459 = vmul.f32 %v448, 1.442695
          %v460 = vpow.pop %v459
          %v461 = vmul.f32 %v449, 1.442695
          %v462 = vpow.pop %v461
          %v463 = vmul.f32 %v450, 1.442695
          %v464 = vpow.pop %v463
          %v465 = vmul.f32 %v451, 1.442695
          %v466 = vpow.pop %v465
          %v467 = vmul.f32 %v452, 1.442695
          %v468 = vpow.pop %v467
          %v469 = vadd.f32 %v454, 1.0
          %v470 = vadd.f32 %v456, 1.0
          %v471 = vadd.f32 %v458, 1.0
          %v472 = vadd.f32 %v460, 1.0
          %v473 = vadd.f32 %v462, 1.0
          %v474 = vadd.f32 %v464, 1.0
          %v475 = vadd.f32 %v466, 1.0
          %v476 = vadd.f32 %v468, 1.0
          %v477 = vrcp.pop %v469
          %v478 = vmul.f32 1.0, %v477
          %v479 = vrcp.pop %v470
          %v480 = vmul.f32 1.0, %v479
          %v481 = vrcp.pop %v471
          %v482 = vmul.f32 1.0, %v481
          %v483 = vrcp.pop %v472
          %v484 = vmul.f32 1.0, %v483
          %v485 = vrcp.pop %v473
          %v486 = vmul.f32 1.0, %v485
          %v487 = vrcp.pop %v474
          %v488 = vmul.f32 1.0, %v487
          %v489 = vrcp.pop %v475
          %v490 = vmul.f32 1.0, %v489
          %v491 = vrcp.pop %v476
          %v492 = vmul.f32 1.0, %v491
          %v493 = vmax.f32 %v373, 0.0
          %v494 = vmax.f32 %v374, 0.0
          %v495 = vmax.f32 %v375, 0.0
          %v496 = vmax.f32 %v376, 0.0
          %v497 = vmax.f32 %v377, 0.0
          %v498 = vmax.f32 %v378, 0.0
          %v499 = vmax.f32 %v379, 0.0
          %v500 = vmax.f32 %v380, 0.0
          %v501 = vand.u32 2147483647, %v373
          %v502 = vand.u32 2147483647, %v374
          %v503 = vand.u32 2147483647, %v375
          %v504 = vand.u32 2147483647, %v376
          %v505 = vand.u32 2147483647, %v377
          %v506 = vand.u32 2147483647, %v378
          %v507 = vand.u32 2147483647, %v379
          %v508 = vand.u32 2147483647, %v380
          %v509 = vsub.f32 0.0, %v501
          %v510 = vsub.f32 0.0, %v502
          %v511 = vsub.f32 0.0, %v503
          %v512 = vsub.f32 0.0, %v504
          %v513 = vsub.f32 0.0, %v505
          %v514 = vsub.f32 0.0, %v506
          %v515 = vsub.f32 0.0, %v507
          %v516 = vsub.f32 0.0, %v508
          %v517 = vmul.f32 %v509, 1.442695
          %v518 = vpow.pop %v517
          %v519 = vmul.f32 %v510, 1.442695
          %v520 = vpow.pop %v519
          %v521 = vmul.f32 %v511, 1.442695
          %v522 = vpow.pop %v521
          %v523 = vmul.f32 %v512, 1.442695
          %v524 = vpow.pop %v523
          %v525 = vmul.f32 %v513, 1.442695
          %v526 = vpow.pop %v525
          %v527 = vmul.f32 %v514, 1.442695
          %v528 = vpow.pop %v527
          %v529 = vmul.f32 %v515, 1.442695
          %v530 = vpow.pop %v529
          %v531 = vmul.f32 %v516, 1.442695
          %v532 = vpow.pop %v531
          %v533 = vadd.f32 %v518, 1.0
          %v534 = vadd.f32 %v520, 1.0
          %v535 = vadd.f32 %v522, 1.0
          %v536 = vadd.f32 %v524, 1.0
          %v537 = vadd.f32 %v526, 1.0
          %v538 = vadd.f32 %v528, 1.0
          %v539 = vadd.f32 %v530, 1.0
          %v540 = vadd.f32 %v532, 1.0
          %v541 = vlog2.pop %v533
          %v542 = vmul.f32 %v541, 0.6931472
          %v543 = vlog2.pop %v534
          %v544 = vmul.f32 %v543, 0.6931472
          %v545 = vlog2.pop %v535
          %v546 = vmul.f32 %v545, 0.6931472
          %v547 = vlog2.pop %v536
          %v548 = vmul.f32 %v547, 0.6931472
          %v549 = vlog2.pop %v537
          %v550 = vmul.f32 %v549, 0.6931472
          %v551 = vlog2.pop %v538
          %v552 = vmul.f32 %v551, 0.6931472
          %v553 = vlog2.pop %v539
          %v554 = vmul.f32 %v553, 0.6931472
          %v555 = vlog2.pop %v540
          %v556 = vmul.f32 %v555, 0.6931472
          %v557 = vadd.f32 %v493, %v542
          %v558 = vadd.f32 %v494, %v544
          %v559 = vadd.f32 %v495, %v546
          %v560 = vadd.f32 %v496, %v548
          %v561 = vadd.f32 %v497, %v550
          %v562 = vadd.f32 %v498, %v552
          %v563 = vadd.f32 %v499, %v554
          %v564 = vadd.f32 %v500, %v556
          %v565 = vsub.f32 %v373, %v557
          %v566 = vsub.f32 %v374, %v558
          %v567 = vsub.f32 %v375, %v559
          %v568 = vsub.f32 %v376, %v560
          %v569 = vsub.f32 %v377, %v561
          %v570 = vsub.f32 %v378, %v562
          %v571 = vsub.f32 %v379, %v563
          %v572 = vsub.f32 %v380, %v564
          %v573 = vmax.f32 %v389, 0.0
          %v574 = vmax.f32 %v390, 0.0
          %v575 = vmax.f32 %v391, 0.0
          %v576 = vmax.f32 %v392, 0.0
          %v577 = vmax.f32 %v393, 0.0
          %v578 = vmax.f32 %v394, 0.0
          %v579 = vmax.f32 %v395, 0.0
          %v580 = vmax.f32 %v396, 0.0
          %v581 = vand.u32 2147483647, %v389
          %v582 = vand.u32 2147483647, %v390
          %v583 = vand.u32 2147483647, %v391
          %v584 = vand.u32 2147483647, %v392
          %v585 = vand.u32 2147483647, %v393
          %v586 = vand.u32 2147483647, %v394
          %v587 = vand.u32 2147483647, %v395
          %v588 = vand.u32 2147483647, %v396
          %v589 = vsub.f32 0.0, %v581
          %v590 = vsub.f32 0.0, %v582
          %v591 = vsub.f32 0.0, %v583
          %v592 = vsub.f32 0.0, %v584
          %v593 = vsub.f32 0.0, %v585
          %v594 = vsub.f32 0.0, %v586
          %v595 = vsub.f32 0.0, %v587
          %v596 = vsub.f32 0.0, %v588
          %v597 = vmul.f32 %v589, 1.442695
          %v598 = vpow.pop %v597
          %v599 = vmul.f32 %v590, 1.442695
          %v600 = vpow.pop %v599
          %v601 = vmul.f32 %v591, 1.442695
          %v602 = vpow.pop %v601
          %v603 = vmul.f32 %v592, 1.442695
          %v604 = vpow.pop %v603
          %v605 = vmul.f32 %v593, 1.442695
          %v606 = vpow.pop %v605
          %v607 = vmul.f32 %v594, 1.442695
          %v608 = vpow.pop %v607
          %v609 = vmul.f32 %v595, 1.442695
          %v610 = vpow.pop %v609
          %v611 = vmul.f32 %v596, 1.442695
          %v612 = vpow.pop %v611
          %v613 = vadd.f32 %v598, 1.0
          %v614 = vadd.f32 %v600, 1.0
          %v615 = vadd.f32 %v602, 1.0
          %v616 = vadd.f32 %v604, 1.0
          %v617 = vadd.f32 %v606, 1.0
          %v618 = vadd.f32 %v608, 1.0
          %v619 = vadd.f32 %v610, 1.0
          %v620 = vadd.f32 %v612, 1.0
          %v621 = vlog2.pop %v613
          %v622 = vmul.f32 %v621, 0.6931472
          %v623 = vlog2.pop %v614
          %v624 = vmul.f32 %v623, 0.6931472
          %v625 = vlog2.pop %v615
          %v626 = vmul.f32 %v625, 0.6931472
          %v627 = vlog2.pop %v616
          %v628 = vmul.f32 %v627, 0.6931472
          %v629 = vlog2.pop %v617
          %v630 = vmul.f32 %v629, 0.6931472
          %v631 = vlog2.pop %v618
          %v632 = vmul.f32 %v631, 0.6931472
          %v633 = vlog2.pop %v619
          %v634 = vmul.f32 %v633, 0.6931472
          %v635 = vlog2.pop %v620
          %v636 = vmul.f32 %v635, 0.6931472
          %v637 = vadd.f32 %v573, %v622
          %v638 = vadd.f32 %v574, %v624
          %v639 = vadd.f32 %v575, %v626
          %v640 = vadd.f32 %v576, %v628
          %v641 = vadd.f32 %v577, %v630
          %v642 = vadd.f32 %v578, %v632
          %v643 = vadd.f32 %v579, %v634
          %v644 = vadd.f32 %v580, %v636
          %v645 = vsub.f32 0.0, %v637
          %v646 = vsub.f32 0.0, %v638
          %v647 = vsub.f32 0.0, %v639
          %v648 = vsub.f32 0.0, %v640
          %v649 = vsub.f32 0.0, %v641
          %v650 = vsub.f32 0.0, %v642
          %v651 = vsub.f32 0.0, %v643
          %v652 = vsub.f32 0.0, %v644
          %v653 = vsub.f32 %v430, %v478
          %v654 = vsub.f32 %v432, %v480
          %v655 = vsub.f32 %v434, %v482
          %v656 = vsub.f32 %v436, %v484
          %v657 = vsub.f32 %v438, %v486
          %v658 = vsub.f32 %v440, %v488
          %v659 = vsub.f32 %v442, %v490
          %v660 = vsub.f32 %v444, %v492
          %v661 = vmul.f32 %v350, %v333
          %v662 = vmul.f32 %v352, %v334
          %v663 = vmul.f32 %v354, %v335
          %v664 = vmul.f32 %v356, %v336
          %v665 = vmul.f32 %v358, %v337
          %v666 = vmul.f32 %v360, %v338
          %v667 = vmul.f32 %v362, %v339
          %v668 = vmul.f32 %v364, %v340
          %v669 = vsub.f32 %v661, %v303
          %v670 = vsub.f32 %v662, %v304
          %v671 = vsub.f32 %v663, %v305
          %v672 = vsub.f32 %v664, %v306
          %v673 = vsub.f32 %v665, %v307
          %v674 = vsub.f32 %v666, %v308
          %v675 = vsub.f32 %v667, %v309
          %v676 = vsub.f32 %v668, %v310
          %v677 = vmax.f32 %v661, 0.0
          %v678 = vmax.f32 %v662, 0.0
          %v679 = vmax.f32 %v663, 0.0
          %v680 = vmax.f32 %v664, 0.0
          %v681 = vmax.f32 %v665, 0.0
          %v682 = vmax.f32 %v666, 0.0
          %v683 = vmax.f32 %v667, 0.0
          %v684 = vmax.f32 %v668, 0.0
          %v685 = vand.u32 2147483647, %v661
          %v686 = vand.u32 2147483647, %v662
          %v687 = vand.u32 2147483647, %v663
          %v688 = vand.u32 2147483647, %v664
          %v689 = vand.u32 2147483647, %v665
          %v690 = vand.u32 2147483647, %v666
          %v691 = vand.u32 2147483647, %v667
          %v692 = vand.u32 2147483647, %v668
          %v693 = vsub.f32 0.0, %v685
          %v694 = vsub.f32 0.0, %v686
          %v695 = vsub.f32 0.0, %v687
          %v696 = vsub.f32 0.0, %v688
          %v697 = vsub.f32 0.0, %v689
          %v698 = vsub.f32 0.0, %v690
          %v699 = vsub.f32 0.0, %v691
          %v700 = vsub.f32 0.0, %v692
          %v701 = vmul.f32 %v693, 1.442695
          %v702 = vpow.pop %v701
          %v703 = vmul.f32 %v694, 1.442695
          %v704 = vpow.pop %v703
          %v705 = vmul.f32 %v695, 1.442695
          %v706 = vpow.pop %v705
          %v707 = vmul.f32 %v696, 1.442695
          %v708 = vpow.pop %v707
          %v709 = vmul.f32 %v697, 1.442695
          %v710 = vpow.pop %v709
          %v711 = vmul.f32 %v698, 1.442695
          %v712 = vpow.pop %v711
          %v713 = vmul.f32 %v699, 1.442695
          %v714 = vpow.pop %v713
          %v715 = vmul.f32 %v700, 1.442695
          %v716 = vpow.pop %v715
          %v717 = vadd.f32 %v702, 1.0
          %v718 = vadd.f32 %v704, 1.0
          %v719 = vadd.f32 %v706, 1.0
          %v720 = vadd.f32 %v708, 1.0
          %v721 = vadd.f32 %v710, 1.0
          %v722 = vadd.f32 %v712, 1.0
          %v723 = vadd.f32 %v714, 1.0
          %v724 = vadd.f32 %v716, 1.0
          %v725 = vlog2.pop %v717
          %v726 = vmul.f32 %v725, 0.6931472
          %v727 = vlog2.pop %v718
          %v728 = vmul.f32 %v727, 0.6931472
          %v729 = vlog2.pop %v719
          %v730 = vmul.f32 %v729, 0.6931472
          %v731 = vlog2.pop %v720
          %v732 = vmul.f32 %v731, 0.6931472
          %v733 = vlog2.pop %v721
          %v734 = vmul.f32 %v733, 0.6931472
          %v735 = vlog2.pop %v722
          %v736 = vmul.f32 %v735, 0.6931472
          %v737 = vlog2.pop %v723
          %v738 = vmul.f32 %v737, 0.6931472
          %v739 = vlog2.pop %v724
          %v740 = vmul.f32 %v739, 0.6931472
          %v741 = vadd.f32 %v677, %v726
          %v742 = vadd.f32 %v678, %v728
          %v743 = vadd.f32 %v679, %v730
          %v744 = vadd.f32 %v680, %v732
          %v745 = vadd.f32 %v681, %v734
          %v746 = vadd.f32 %v682, %v736
          %v747 = vadd.f32 %v683, %v738
          %v748 = vadd.f32 %v684, %v740
          %v749 = vmul.f32 %v741, 2.0
          %v750 = vmul.f32 %v742, 2.0
          %v751 = vmul.f32 %v743, 2.0
          %v752 = vmul.f32 %v744, 2.0
          %v753 = vmul.f32 %v745, 2.0
          %v754 = vmul.f32 %v746, 2.0
          %v755 = vmul.f32 %v747, 2.0
          %v756 = vmul.f32 %v748, 2.0
          %v757 = vsub.f32 %v669, %v749
          %v758 = vsub.f32 %v670, %v750
          %v759 = vsub.f32 %v671, %v751
          %v760 = vsub.f32 %v672, %v752
          %v761 = vsub.f32 %v673, %v753
          %v762 = vsub.f32 %v674, %v754
          %v763 = vsub.f32 %v675, %v755
          %v764 = vsub.f32 %v676, %v756
          %vm765 = vcmp.gt.f32.partialorder %v653, 1e-05
          %vm766 = vcmp.gt.f32.partialorder %v654, 1e-05
          %vm767 = vcmp.gt.f32.partialorder %v655, 1e-05
          %vm768 = vcmp.gt.f32.partialorder %v656, 1e-05
          %vm769 = vcmp.gt.f32.partialorder %v657, 1e-05
          %vm770 = vcmp.gt.f32.partialorder %v658, 1e-05
          %vm771 = vcmp.gt.f32.partialorder %v659, 1e-05
          %vm772 = vcmp.gt.f32.partialorder %v660, 1e-05
          %v773 = vmax.f32 %v653, 1e-12
          %v774 = vmax.f32 %v654, 1e-12
          %v775 = vmax.f32 %v655, 1e-12
          %v776 = vmax.f32 %v656, 1e-12
          %v777 = vmax.f32 %v657, 1e-12
          %v778 = vmax.f32 %v658, 1e-12
          %v779 = vmax.f32 %v659, 1e-12
          %v780 = vmax.f32 %v660, 1e-12
          %v781 = vlog2.pop %v773
          %v782 = vmul.f32 %v781, 0.6931472
          %v783 = vlog2.pop %v774
          %v784 = vmul.f32 %v783, 0.6931472
          %v785 = vlog2.pop %v775
          %v786 = vmul.f32 %v785, 0.6931472
          %v787 = vlog2.pop %v776
          %v788 = vmul.f32 %v787, 0.6931472
          %v789 = vlog2.pop %v777
          %v790 = vmul.f32 %v789, 0.6931472
          %v791 = vlog2.pop %v778
          %v792 = vmul.f32 %v791, 0.6931472
          %v793 = vlog2.pop %v779
          %v794 = vmul.f32 %v793, 0.6931472
          %v795 = vlog2.pop %v780
          %v796 = vmul.f32 %v795, 0.6931472
          %v797 = vsub.f32 %v757, 4.8481164
          %v798 = vsub.f32 %v758, 4.8481164
          %v799 = vsub.f32 %v759, 4.8481164
          %v800 = vsub.f32 %v760, 4.8481164
          %v801 = vsub.f32 %v761, 4.8481164
          %v802 = vsub.f32 %v762, 4.8481164
          %v803 = vsub.f32 %v763, 4.8481164
          %v804 = vsub.f32 %v764, 4.8481164
          %v805 = vsel %vm765, %v782, %v797
          %v806 = vsel %vm766, %v784, %v798
          %v807 = vsel %vm767, %v786, %v799
          %v808 = vsel %vm768, %v788, %v800
          %v809 = vsel %vm769, %v790, %v801
          %v810 = vsel %vm770, %v792, %v802
          %v811 = vsel %vm771, %v794, %v803
          %v812 = vsel %vm772, %v796, %v804
          %vm813 = vcmp.gt.f32.partialorder %v311, 0.999
          %v814 = vsel %vm813, 1, 0
          %v815 = vlaneseq
          %v816 = vshrl.u32 %v815, 7
          %v817 = vsub.s32 0, %v816
          %v818 = vrot.slane %v814, %v817
          %v819 = vlaneseq
          %v820 = vshrl.u32 %v819, 7
          %v821 = vsub.s32 1, %v820
          %v822 = vrot.slane %v814, %v821
          %v823 = vlaneseq
          %v824 = vshrl.u32 %v823, 7
          %v825 = vsub.s32 2, %v824
          %v826 = vrot.slane %v814, %v825
          %v827 = vlaneseq
          %v828 = vshrl.u32 %v827, 7
          %v829 = vsub.s32 3, %v828
          %v830 = vrot.slane %v814, %v829
          %vm831 = vcmp.eq.s32.totalorder %v818, 1
          %vm832 = vcmp.eq.s32.totalorder %v822, 1
          %vm833 = vcmp.eq.s32.totalorder %v826, 1
          %vm834 = vcmp.eq.s32.totalorder %v830, 1
          %v835 = vsel %vm831, %v645, %v805
          %v836 = vsel %vm832, %v646, %v806
          %v837 = vsel %vm833, %v647, %v807
          %v838 = vsel %vm834, %v648, %v808
          %v839 = vsel %vm831, %v649, %v809
          %v840 = vsel %vm832, %v650, %v810
          %v841 = vsel %vm833, %v651, %v811
          %v842 = vsel %vm834, %v652, %v812
          %vm843 = vcmp.lt.f32.partialorder %v311, -0.999
          %v844 = vsel %vm843, 1, 0
          %v845 = vlaneseq
          %v846 = vshrl.u32 %v845, 7
          %v847 = vsub.s32 0, %v846
          %v848 = vrot.slane %v844, %v847
          %v849 = vlaneseq
          %v850 = vshrl.u32 %v849, 7
          %v851 = vsub.s32 1, %v850
          %v852 = vrot.slane %v844, %v851
          %v853 = vlaneseq
          %v854 = vshrl.u32 %v853, 7
          %v855 = vsub.s32 2, %v854
          %v856 = vrot.slane %v844, %v855
          %v857 = vlaneseq
          %v858 = vshrl.u32 %v857, 7
          %v859 = vsub.s32 3, %v858
          %v860 = vrot.slane %v844, %v859
          %vm861 = vcmp.eq.s32.totalorder %v848, 1
          %vm862 = vcmp.eq.s32.totalorder %v852, 1
          %vm863 = vcmp.eq.s32.totalorder %v856, 1
          %vm864 = vcmp.eq.s32.totalorder %v860, 1
          %v865 = vsel %vm861, %v565, %v835
          %v866 = vsel %vm862, %v566, %v836
          %v867 = vsel %vm863, %v567, %v837
          %v868 = vsel %vm864, %v568, %v838
          %v869 = vsel %vm861, %v569, %v839
          %v870 = vsel %vm862, %v570, %v840
          %v871 = vsel %vm863, %v571, %v841
          %v872 = vsel %vm864, %v572, %v842
          %vm873 = vcmask 1041408
          %v874 = vsel %vm873, %v283, -inf
          %v875 = vmax.f32 %v279, %v874
          %v876 = vrot.slane %v875, 4
          %v877 = vmax.f32 %v875, %v876
          %v878 = vrot.slane %v877, 2
          %v879 = vmax.f32 %v877, %v878
          %v880 = vrot.slane %v879, 1
          %v881 = vmax.f32 %v879, %v880
          %v882 = vsel %vm873, %v284, -inf
          %v883 = vmax.f32 %v280, %v882
          %v884 = vrot.slane %v883, 4
          %v885 = vmax.f32 %v883, %v884
          %v886 = vrot.slane %v885, 2
          %v887 = vmax.f32 %v885, %v886
          %v888 = vrot.slane %v887, 1
          %v889 = vmax.f32 %v887, %v888
          %v890 = vsel %vm873, %v285, -inf
          %v891 = vmax.f32 %v281, %v890
          %v892 = vrot.slane %v891, 4
          %v893 = vmax.f32 %v891, %v892
          %v894 = vrot.slane %v893, 2
          %v895 = vmax.f32 %v893, %v894
          %v896 = vrot.slane %v895, 1
          %v897 = vmax.f32 %v895, %v896
          %v898 = vsel %vm873, %v286, -inf
          %v899 = vmax.f32 %v282, %v898
          %v900 = vrot.slane %v899, 4
          %v901 = vmax.f32 %v899, %v900
          %v902 = vrot.slane %v901, 2
          %v903 = vmax.f32 %v901, %v902
          %v904 = vrot.slane %v903, 1
          %v905 = vmax.f32 %v903, %v904
          %v906 = vsub.f32 %v279, %v881
          %v907 = vsub.f32 %v280, %v889
          %v908 = vsub.f32 %v281, %v897
          %v909 = vsub.f32 %v282, %v905
          %v910 = vsub.f32 %v283, %v881
          %v911 = vsub.f32 %v284, %v889
          %v912 = vsub.f32 %v285, %v897
          %v913 = vsub.f32 %v286, %v905
          %v914 = vmul.f32 %v906, 1.442695
          %v915 = vpow.pop %v914
          %v916 = vmul.f32 %v907, 1.442695
          %v917 = vpow.pop %v916
          %v918 = vmul.f32 %v908, 1.442695
          %v919 = vpow.pop %v918
          %v920 = vmul.f32 %v909, 1.442695
          %v921 = vpow.pop %v920
          %v922 = vmul.f32 %v910, 1.442695
          %v923 = vpow.pop %v922
          %v924 = vmul.f32 %v911, 1.442695
          %v925 = vpow.pop %v924
          %v926 = vmul.f32 %v912, 1.442695
          %v927 = vpow.pop %v926
          %v928 = vmul.f32 %v913, 1.442695
          %v929 = vpow.pop %v928
          %v930 = vsel %vm873, %v923, 0.0
          %v931 = vadd.f32 %v915, %v930
          %v932 = vrot.slane %v931, 4
          %v933 = vadd.f32 %v931, %v932
          %v934 = vrot.slane %v933, 2
          %v935 = vadd.f32 %v933, %v934
          %v936 = vrot.slane %v935, 1
          %v937 = vadd.f32 %v935, %v936
          %v938 = vsel %vm873, %v925, 0.0
          %v939 = vadd.f32 %v917, %v938
          %v940 = vrot.slane %v939, 4
          %v941 = vadd.f32 %v939, %v940
          %v942 = vrot.slane %v941, 2
          %v943 = vadd.f32 %v941, %v942
          %v944 = vrot.slane %v943, 1
          %v945 = vadd.f32 %v943, %v944
          %v946 = vsel %vm873, %v927, 0.0
          %v947 = vadd.f32 %v919, %v946
          %v948 = vrot.slane %v947, 4
          %v949 = vadd.f32 %v947, %v948
          %v950 = vrot.slane %v949, 2
          %v951 = vadd.f32 %v949, %v950
          %v952 = vrot.slane %v951, 1
          %v953 = vadd.f32 %v951, %v952
          %v954 = vsel %vm873, %v929, 0.0
          %v955 = vadd.f32 %v921, %v954
          %v956 = vrot.slane %v955, 4
          %v957 = vadd.f32 %v955, %v956
          %v958 = vrot.slane %v957, 2
          %v959 = vadd.f32 %v957, %v958
          %v960 = vrot.slane %v959, 1
          %v961 = vadd.f32 %v959, %v960
          %v962 = vlog2.pop %v937
          %v963 = vmul.f32 %v962, 0.6931472
          %v964 = vlog2.pop %v945
          %v965 = vmul.f32 %v964, 0.6931472
          %v966 = vlog2.pop %v953
          %v967 = vmul.f32 %v966, 0.6931472
          %v968 = vlog2.pop %v961
          %v969 = vmul.f32 %v968, 0.6931472
          %v970 = vadd.f32 %v881, %v963
          %v971 = vadd.f32 %v889, %v965
          %v972 = vadd.f32 %v897, %v967
          %v973 = vadd.f32 %v905, %v969
          %v974 = vsub.f32 %v279, %v970
          %v975 = vsub.f32 %v280, %v971
          %v976 = vsub.f32 %v281, %v972
          %v977 = vsub.f32 %v282, %v973
          %v978 = vsub.f32 %v283, %v970
          %v979 = vsub.f32 %v284, %v971
          %v980 = vsub.f32 %v285, %v972
          %v981 = vsub.f32 %v286, %v973
          %v982 = vadd.f32 %v865, %v974
          %v983 = vadd.f32 %v866, %v975
          %v984 = vadd.f32 %v867, %v976
          %v985 = vadd.f32 %v868, %v977
          %v986 = vadd.f32 %v869, %v978
          %v987 = vadd.f32 %v870, %v979
          %v988 = vadd.f32 %v871, %v980
          %v989 = vadd.f32 %v872, %v981
          %v990 = vsel %vm873, %v986, -inf
          %v991 = vmax.f32 %v982, %v990
          %v992 = vrot.slane %v991, 4
          %v993 = vmax.f32 %v991, %v992
          %v994 = vrot.slane %v993, 2
          %v995 = vmax.f32 %v993, %v994
          %v996 = vrot.slane %v995, 1
          %v997 = vmax.f32 %v995, %v996
          %v998 = vsel %vm873, %v987, -inf
          %v999 = vmax.f32 %v983, %v998
          %v1000 = vrot.slane %v999, 4
          %v1001 = vmax.f32 %v999, %v1000
          %v1002 = vrot.slane %v1001, 2
          %v1003 = vmax.f32 %v1001, %v1002
          %v1004 = vrot.slane %v1003, 1
          %v1005 = vmax.f32 %v1003, %v1004
          %v1006 = vsel %vm873, %v988, -inf
          %v1007 = vmax.f32 %v984, %v1006
          %v1008 = vrot.slane %v1007, 4
          %v1009 = vmax.f32 %v1007, %v1008
          %v1010 = vrot.slane %v1009, 2
          %v1011 = vmax.f32 %v1009, %v1010
          %v1012 = vrot.slane %v1011, 1
          %v1013 = vmax.f32 %v1011, %v1012
          %v1014 = vsel %vm873, %v989, -inf
          %v1015 = vmax.f32 %v985, %v1014
          %v1016 = vrot.slane %v1015, 4
          %v1017 = vmax.f32 %v1015, %v1016
          %v1018 = vrot.slane %v1017, 2
          %v1019 = vmax.f32 %v1017, %v1018
          %v1020 = vrot.slane %v1019, 1
          %v1021 = vmax.f32 %v1019, %v1020
          %v1022 = vsub.f32 %v982, %v997
          %v1023 = vsub.f32 %v983, %v1005
          %v1024 = vsub.f32 %v984, %v1013
          %v1025 = vsub.f32 %v985, %v1021
          %v1026 = vsub.f32 %v986, %v997
          %v1027 = vsub.f32 %v987, %v1005
          %v1028 = vsub.f32 %v988, %v1013
          %v1029 = vsub.f32 %v989, %v1021
          %v1030 = vmul.f32 %v1022, 1.442695
          %v1031 = vpow.pop %v1030
          %v1032 = vmul.f32 %v1023, 1.442695
          %v1033 = vpow.pop %v1032
          %v1034 = vmul.f32 %v1024, 1.442695
          %v1035 = vpow.pop %v1034
          %v1036 = vmul.f32 %v1025, 1.442695
          %v1037 = vpow.pop %v1036
          %v1038 = vmul.f32 %v1026, 1.442695
          %v1039 = vpow.pop %v1038
          %v1040 = vmul.f32 %v1027, 1.442695
          %v1041 = vpow.pop %v1040
          %v1042 = vmul.f32 %v1028, 1.442695
          %v1043 = vpow.pop %v1042
          %v1044 = vmul.f32 %v1029, 1.442695
          %v1045 = vpow.pop %v1044
          %v1046 = vsel %vm873, %v1039, 0.0
          %v1047 = vadd.f32 %v1031, %v1046
          %v1048 = vrot.slane %v1047, 4
          %v1049 = vadd.f32 %v1047, %v1048
          %v1050 = vrot.slane %v1049, 2
          %v1051 = vadd.f32 %v1049, %v1050
          %v1052 = vrot.slane %v1051, 1
          %v1053 = vadd.f32 %v1051, %v1052
          %v1054 = vsel %vm873, %v1041, 0.0
          %v1055 = vadd.f32 %v1033, %v1054
          %v1056 = vrot.slane %v1055, 4
          %v1057 = vadd.f32 %v1055, %v1056
          %v1058 = vrot.slane %v1057, 2
          %v1059 = vadd.f32 %v1057, %v1058
          %v1060 = vrot.slane %v1059, 1
          %v1061 = vadd.f32 %v1059, %v1060
          %v1062 = vsel %vm873, %v1043, 0.0
          %v1063 = vadd.f32 %v1035, %v1062
          %v1064 = vrot.slane %v1063, 4
          %v1065 = vadd.f32 %v1063, %v1064
          %v1066 = vrot.slane %v1065, 2
          %v1067 = vadd.f32 %v1065, %v1066
          %v1068 = vrot.slane %v1067, 1
          %v1069 = vadd.f32 %v1067, %v1068
          %v1070 = vsel %vm873, %v1045, 0.0
          %v1071 = vadd.f32 %v1037, %v1070
          %v1072 = vrot.slane %v1071, 4
          %v1073 = vadd.f32 %v1071, %v1072
          %v1074 = vrot.slane %v1073, 2
          %v1075 = vadd.f32 %v1073, %v1074
          %v1076 = vrot.slane %v1075, 1
          %v1077 = vadd.f32 %v1075, %v1076
          %v1078 = vlog2.pop %v1053
          %v1079 = vmul.f32 %v1078, 0.6931472
          %v1080 = vlog2.pop %v1061
          %v1081 = vmul.f32 %v1080, 0.6931472
          %v1082 = vlog2.pop %v1069
          %v1083 = vmul.f32 %v1082, 0.6931472
          %v1084 = vlog2.pop %v1077
          %v1085 = vmul.f32 %v1084, 0.6931472
          %v1086 = vadd.f32 %v997, %v1079
          %v1087 = vadd.f32 %v1005, %v1081
          %v1088 = vadd.f32 %v1013, %v1083
          %v1089 = vadd.f32 %v1021, %v1085
          %v1090 = vsub.f32 0.0, %v1086
          %v1091 = vsub.f32 0.0, %v1087
          %v1092 = vsub.f32 0.0, %v1088
          %v1093 = vsub.f32 0.0, %v1089
          %v1094 = vlaneseq
          %v1095 = vand.u32 %v1094, 127
          %v1096 = vadd.s32 %v1095, 128
          %v1097 = vadd.s32 %v1095, 256
          %v1098 = vadd.s32 %v1095, 384
          %v1099 = vstv %s274
          %v1100 = vadd.s32 %v1095, %v1099
          %v1101 = vadd.s32 %v1096, %v1099
          %v1102 = vadd.s32 %v1097, %v1099
          %v1103 = vadd.s32 %v1098, %v1099
          %v1104 = vstv %s273
          %vm1105 = vcmp.lt.s32.totalorder %v1100, %v1104
          %vm1106 = vcmp.lt.s32.totalorder %v1101, %v1104
          %vm1107 = vcmp.lt.s32.totalorder %v1102, %v1104
          %vm1108 = vcmp.lt.s32.totalorder %v1103, %v1104
          %v1109 = vsel %vm1105, 1, 0
          %v1110 = vsel %vm1106, 1, 0
          %v1111 = vsel %vm1107, 1, 0
          %v1112 = vsel %vm1108, 1, 0
          %v1113 = vcvt.s32.f32 %v1109
          %v1114 = vcvt.s32.f32 %v1110
          %v1115 = vcvt.s32.f32 %v1111
          %v1116 = vcvt.s32.f32 %v1112
          %v1117 = vld [vmem:[#allocation2] sm:$0xf]
          %v1118 = vmul.f32 %v1090, %v1113
          %v1119 = vmul.f32 %v1091, %v1114
          %v1120 = vmul.f32 %v1092, %v1115
          %v1121 = vmul.f32 %v1093, %v1116
          %v1126 = vcombine.low %v1118, %v1119
          %v1127 = vcombine.low %v1120, %v1121
          %v1129 = vunpack.c.l.s4 1966171168
          %v1130 = vunpack.c.0.s8 %v1129
          %v1131 = vlaneseq
          %v1132 = vshrl.u32 %v1131, 7
          %v1133 = vsub.s32 %v1130, %v1132
          %v1134 = vrot.slane %v1126, %v1133
          %v1136 = vunpack.c.l.s4 1966171168
          %v1137 = vunpack.c.0.s8 %v1136
          %v1138 = vlaneseq
          %v1139 = vshrl.u32 %v1138, 7
          %v1140 = vsub.s32 %v1137, %v1139
          %v1141 = vrot.slane %v1127, %v1140
          %v1142 = vcombine.low %v1134, %v1141
          %v1144 = vunpack.c.l.s4 1966171168
          %v1145 = vunpack.c.0.s8 %v1144
          %v1146 = vlaneseq
          %v1147 = vshrl.u32 %v1146, 7
          %v1148 = vsub.s32 %v1145, %v1147
          %v1149 = vrot.slane %v1142, %v1148
          %v1151 = vadd.f32 %v1117, %v1149
          %v1152 = vlaneseq
          %vm1153 = vcmp.ge.s32.totalorder %v1152, 0
          %vm1154 = vcmp.lt.s32.totalorder %v1152, 512
          %vm1155 = vmand %vm1153, %vm1154
          %1156 = vst.msk [vmem:[#allocation2] sm:$0xf] %vm1155, %v1151
        $region59: #{tpu_custom_call.1} parent=46 // pred_fallthru
          _
        %p1157 = scmp.eq.s32.totalorder %s28, 1
        // Predicated region
        $region60: #{tpu_custom_call.1} parent=46 // pred_check
          %p1158 = pneg %p1157
        $region61: #{tpu_custom_call.1} parent=46 // pred_check_branch
          %1160 = sbr.rel (%p1158) target = $region63
        $region62: #{tpu_custom_call.1} parent=46 // pred_region
          %v1161 = vld [vmem:[#allocation2] sm:$0x1]
          %v1162 = vld [vmem:[#allocation2 + $0x1] sm:$0x1]
          %v1163 = vadd.f32 %v1161, %v1162
          %v1164 = vld [vmem:[#allocation2 + $0x2] sm:$0x1]
          %v1165 = vadd.f32 %v1163, %v1164
          %v1166 = vld [vmem:[#allocation2 + $0x3] sm:$0x1]
          %v1167 = vadd.f32 %v1165, %v1166
          %1168 = vst [vmem:[%s253] sm:$0x1] %v1167
        $region63: #{tpu_custom_call.1} parent=46 // pred_fallthru
          _
        %s1169 = sand.u32 %s99, 1
        %s1170 = scalar_lea.sflag [#allocation7], %s1169
        %s1171 = sand.u32 %s99, 1
        %s1172 = scalar_lea.vmem [#allocation6], %s1171
        // Predicated region
        $region64: #{tpu_custom_call.1} parent=46 // pred_check
          %p1173 = pneg %p109
        $region65: #{tpu_custom_call.1} parent=46 // pred_check_branch
          %1175 = sbr.rel (%p1173) target = $region67
        $region66: #{tpu_custom_call.1} parent=46 // pred_region
          %s1177 = ssub.s32 16, 16
          %1178 = vsyncadd %s1170, %s1177
          %s1179 = smul.addr %s27, 16
          %s1180 = scalar_lea.hbm %s3, %s1179
          %s1182 = sshll.u32 %s1172, 4
          %s1183 = int_to_ptr.vmem [resolvable:$true] %s1182
          %1185 = dma.vmem_to_hbm [thread:$0]  %s1183, 16, %s1180, %s1170
        $region67: #{tpu_custom_call.1} parent=46 // pred_fallthru
          _
      $region47: #{tpu_custom_call.1} parent=5 // pred_fallthru
        _
      %p1186 = scmp.le.s32.totalorder 2, %s18
      // Predicated region
      $region68: #{tpu_custom_call.1} parent=5 // pred_check
        %p1187 = pneg %p1186
      $region69: #{tpu_custom_call.1} parent=5 // pred_check_branch
        %1189 = sbr.rel (%p1187) target = $region71
      $region70: #{tpu_custom_call.1} parent=5 // pred_region
        %s1190 = ssub.s32 %s18, 2
        // Predicated region
        $region72: #{tpu_custom_call.1} parent=70 // pred_check
          %p1191 = pneg %p115
        $region73: #{tpu_custom_call.1} parent=70 // pred_check_branch
          %1193 = sbr.rel (%p1191) target = $region75
        $region74: #{tpu_custom_call.1} parent=70 // pred_region
          %s1194 = sand.u32 %s100, 1
          %s1195 = scalar_lea.sflag [#allocation7], %s1194
          %s1196 = sand.u32 %s100, 1
          %s1197 = scalar_lea.vmem [#allocation6], %s1196
          %1198 = dma.done %s1195, 16
        $region75: #{tpu_custom_call.1} parent=70 // pred_fallthru
          _
      $region71: #{tpu_custom_call.1} parent=5 // pred_fallthru
        _
    $region6: #{tpu_custom_call.1} parent=1 // loop_footer
      %s22 = sadd.s32 1, %s18
    $region7: #{tpu_custom_call.1} parent=1 // loop_footer_branch
      %17 = sbr.rel target = $region3
    $region8: #{tpu_custom_call.1} parent=1 // loop_exit
      _
    %1199 = vsyncpa [#allocation7], 1
    %s1200 = scalar_lea.sflag [#allocation7], 1
    %1201 = vsyncpa %s1200, 1

</llo_original>
